<compile_context>
chip_gen: v5e
topology: v5e:2x2
jax: 0.10.0
libtpu: 0.0.40
codegen_flags: <defaults>
</compile_context>

<pallas_src>
import jax
import jax.numpy as jnp
import numpy as np
from jax.experimental import pallas as pl
from jax.experimental.pallas import tpu as pltpu

NUM_REL = 4        # [pos-out, pos-in, neg-out, neg-in] (build_adj_lists order)
LAYER_NUM = 2
NEG_BIG = -1e30    # additive off-edge mask value (f32 attention math)


def sdr_layer_kernel(xf_ref, xt_ref, offm_ref, wcat_ref, acat_ref,
                     w1_ref, b1_ref, w2_ref, b2_ref, out_ref):
    """One SDRLayer for one dst-node tile.

    xf_ref   : (N, D)    f32   full node features (resident across the grid)
    xt_ref   : (T, D)    f32   this dst tile's node features
    offm_ref : (4, T, N) int8  1 where edge src->dst ABSENT, 0 on edge / self-loop
    wcat_ref : (D, 4D)   bf16  4 GAT linear weights, pre-transposed, lane-concatenated
    acat_ref : (4D, 8)   f32   block-diag att vectors: col r = att_src_r, col 4+r = att_dst_r
    w1_ref   : (5D, D)   bf16  MLP Linear(5D, D) weight, pre-transposed (GAT bias pre-folded into b1)
    b1_ref   : (1, D)    f32
    w2_ref   : (D, D)    bf16  MLP Linear(D, D) weight, pre-transposed
    b2_ref   : (1, D)    f32
    out_ref  : (T, D)    f32
    """
    D = out_ref.shape[1]

    xt = xt_ref[...]                                            # (T, D) f32
    xt_b = xt.astype(jnp.bfloat16)
    wcat = wcat_ref[...]

    # All 4 head projections for all src nodes: one lane-dense (N, 4D) MXU push.
    h_all = jnp.dot(xf_ref[...].astype(jnp.bfloat16), wcat,
                    preferred_element_type=jnp.float32)         # (N, 4D) f32
    hb_all = h_all.astype(jnp.bfloat16)

    # Per-node attention scalars for all heads via small MXU pushes (no per-head
    # XLU lane-reductions); one transpose brings the src scores to row form.
    acat = acat_ref[...]
    a_src = jnp.dot(h_all, acat[:, :NUM_REL],
                    preferred_element_type=jnp.float32)         # (N, 4)
    a_src_rows = a_src.T                                        # (4, N)
    h_tile = jnp.dot(xt_b, wcat, preferred_element_type=jnp.float32)   # (T, 4D)
    a_dst = jnp.dot(h_tile, acat[:, NUM_REL:],
                    preferred_element_type=jnp.float32)         # (T, 4)

    # Expand the int8 off-edge mask into an additive bias once for all relations.
    bias_all = offm_ref[...].astype(jnp.float32) * NEG_BIG      # (4, T, N)

    neigh = []
    for r in range(NUM_REL):
        # e[i, j] = leaky_relu(a_dst[i] + a_src[j]) + off_edge_bias[i, j]
        e = a_dst[:, r:r + 1] + a_src_rows[r:r + 1, :]          # (T, N)
        e = jnp.maximum(e, 0.2 * e)                             # leaky_relu, slope 0.2
        e = e + bias_all[r]
        e = e - jnp.max(e, axis=-1, keepdims=True)              # self-loop => finite row max
        p = jnp.exp(e)                                          # off-edge underflows to 0.0
        denom = jnp.sum(p, axis=-1, keepdims=True)              # (T, 1), >= 1

        # Unnormalized aggregation on the MXU, then one EUP reciprocal per row.
        agg = jnp.dot(p.astype(jnp.bfloat16), hb_all[:, r * D:(r + 1) * D],
                      preferred_element_type=jnp.float32)       # (T, D)
        neigh.append(agg * pl.reciprocal(denom, approx=True))

    # MLP: cat([x] + heads) -> Linear(5D, D) -> tanh -> Linear(D, D)
    combined = jnp.concatenate([xt] + neigh, axis=-1)           # (T, 5D)
    h1 = jnp.tanh(jnp.dot(combined.astype(jnp.bfloat16), w1_ref[...],
                          preferred_element_type=jnp.float32) + b1_ref[...])
    out_ref[...] = jnp.dot(h1.astype(jnp.bfloat16), w2_ref[...],
                           preferred_element_type=jnp.float32) + b2_ref[...]


def sdr_layer(x, off_mask, layer_params, *, tile=None):
    """One SDRLayer as one pallas_call with a dst-node-tile grid."""
    N, D = x.shape
    wcat, acat, w1, b1, w2, b2 = layer_params
    # Dst-tile size: whole graph for tiny N, else 256 rows (feeds the 256-deep
    # MXU on v6e/v7x; v5e is saturated at 128).
    # TODO(synk): halve T on v7x (64 MiB VMEM) once 2x (4,T,N) int8 blocks + h_all
    # stop fitting, and switch to an online-softmax src loop when 4*T*N overflows.
    T = tile if tile is not None else min(N, 256)
    assert N % T == 0, "TODO(synk): ragged final dst tile not handled"

    def const(shape):
        return pl.BlockSpec(shape, lambda i: (0,) * len(shape))

    return pl.pallas_call(
        sdr_layer_kernel,
        out_shape=jax.ShapeDtypeStruct((N, D), jnp.float32),
        grid=(N // T,),
        in_specs=[
            const((N, D)),                                       # x (full, resident)
            pl.BlockSpec((T, D), lambda i: (i, 0)),              # x (dst tile)
            pl.BlockSpec((NUM_REL, T, N), lambda i: (0, i, 0)),  # int8 off-edge mask (streamed)
            const((D, NUM_REL * D)),                             # wcat
            const((NUM_REL * D, 2 * NUM_REL)),                   # acat
            const(((NUM_REL + 1) * D, D)),                       # w1
            const((1, D)),                                       # b1
            const((D, D)),                                       # w2
            const((1, D)),                                       # b2
        ],
        out_specs=pl.BlockSpec((T, D), lambda i: (i, 0)),
        compiler_params=pltpu.CompilerParams(
            dimension_semantics=("parallel",),
            vmem_limit_bytes=32 * 1024 * 1024),  # safe on all gens; raise on v5e/v6e for big tiles
    )(x, x, off_mask, wcat, acat, w1, b1, w2, b2)


def sdgnn_forward(embeddings, off_mask, packed_layers, *, tile=None):
    x = embeddings
    for lp in packed_layers:
        x = sdr_layer(x, off_mask, lp, tile=tile)
    return x


# ----------------------------- host-side glue -------------------------------

def build_adj_lists(edge_index_s, node_num):
    """Replicates SDGNN.build_adj_lists -> [pos_out, pos_in, neg_out, neg_in]."""
    adj = [[set() for _ in range(node_num)] for _ in range(NUM_REL)]
    for i, j, s in edge_index_s:
        if s == 1:
            adj[0][i].add(j)   # adj_list1_1 (pos out)
            adj[1][j].add(i)   # adj_list1_2 (pos in)
        else:
            adj[2][i].add(j)   # adj_list2_1 (neg out)
            adj[3][j].add(i)   # adj_list2_2 (neg in)
    return adj


def dense_off_mask(adj_lists, node_num):
    """off_mask[r, dst, src] = 0 for edge src->dst (map_adj_to_edges: (a,b) sends a's
    message to b) and for self-loops (GATConv add_self_loops=True); 1 elsewhere."""
    m = np.ones((NUM_REL, node_num, node_num), dtype=np.int8)
    for r, rel in enumerate(adj_lists):
        for a in range(node_num):
            for b in rel[a]:
                m[r, b, a] = 0
        for i in range(node_num):
            m[r, i, i] = 0
    return jnp.asarray(m)


def glorot(key, shape):
    fan_out, fan_in = shape[-2], shape[-1]
    std = (2.0 / (fan_in + fan_out)) ** 0.5
    return std * jax.random.normal(key, shape, dtype=jnp.float32)


def kaiming(key, shape):
    std = (2.0 / shape[-1]) ** 0.5
    return std * jax.random.normal(key, shape, dtype=jnp.float32)


def init_layer_params(key, d):
    """Raw per-layer parameters in PyTorch (out, in) layout."""
    k = jax.random.split(key, 5)
    w = glorot(k[0], (NUM_REL, d, d))                 # GAT linear weights (out, in)
    asrc = glorot(k[1], (NUM_REL, d))                 # GAT attention (src)
    adst = glorot(k[2], (NUM_REL, d))                 # GAT attention (dst)
    gb = jnp.zeros((NUM_REL, d), jnp.float32)         # GAT output bias (zeros)
    w1 = kaiming(k[3], (d, (NUM_REL + 1) * d))        # mlp Linear(5d, d), (out, in)
    b1 = jnp.full((1, d), 0.01, jnp.float32)
    w2 = kaiming(k[4], (d, d))                        # mlp Linear(d, d), (out, in)
    b2 = jnp.full((1, d), 0.01, jnp.float32)
    return w, asrc, adst, gb, w1, b1, w2, b2


def pack_layer_params(raw, d):
    """Pre-transpose / concatenate / fold weights host-side into kernel layout."""
    w, asrc, adst, gb, w1, b1, w2, b2 = raw
    wcat = jnp.concatenate([w[r].T for r in range(NUM_REL)], axis=1)      # (d, 4d)

    acat = np.zeros((NUM_REL * d, 2 * NUM_REL), np.float32)               # block-diag att
    asrc_np, adst_np = np.asarray(asrc), np.asarray(adst)
    for r in range(NUM_REL):
        acat[r * d:(r + 1) * d, r] = asrc_np[r]
        acat[r * d:(r + 1) * d, NUM_REL + r] = adst_np[r]

    w1t = w1.T                                                            # (5d, d)
    gb_fold = sum(gb[r][None, :] @ w1t[(r + 1) * d:(r + 2) * d, :]
                  for r in range(NUM_REL))                                # (1, d)
    b1p = (b1 + gb_fold).astype(jnp.float32)

    return (wcat.astype(jnp.bfloat16), jnp.asarray(acat),
            w1t.astype(jnp.bfloat16), b1p,
            w2.T.astype(jnp.bfloat16), b2)


if __name__ == "__main__":
    NODE_NUM = 16
    DIM = 32          # in_dim == out_dim (as implied by the SDRLayer mlp shapes)
    NUM_EDGES = 48

    root = jax.random.PRNGKey(0)
    k_emb, k_src, k_dst, k_sign, k_l0, k_l1 = jax.random.split(root, 6)

    # deterministic synthetic signed directed edge list (i, j, sign)
    src = jax.random.randint(k_src, (NUM_EDGES,), 0, NODE_NUM)
    dst = jax.random.randint(k_dst, (NUM_EDGES,), 0, NODE_NUM)
    sgn = jnp.where(jax.random.bernoulli(k_sign, 0.5, (NUM_EDGES,)), 1, -1)
    edge_index_s = [(a, b, s) for a, b, s in
                    zip(src.tolist(), dst.tolist(), sgn.tolist()) if a != b]

    adj_lists = build_adj_lists(edge_index_s, NODE_NUM)
    off_mask = dense_off_mask(adj_lists, NODE_NUM)            # (4, N, N) int8

    embeddings = jax.random.normal(k_emb, (NODE_NUM, DIM), dtype=jnp.float32)

    packed = [pack_layer_params(init_layer_params(k, DIM), DIM)
              for k in (k_l0, k_l1)]
    assert len(packed) == LAYER_NUM

    out = sdgnn_forward(embeddings, off_mask, packed)         # (N, DIM)
    out = jax.block_until_ready(out)
    assert out.shape == (NODE_NUM, DIM)
    print("KERNEL_OK")
</pallas_src>

<mosaic_0001>
module attributes {stable_mosaic.version = 11 : i64} {
  func.func @sdr_layer_kernel(%arg0: i32, %arg1: memref<16x32xf32, #tpu.memory_space<vmem>>, %arg2: memref<16x32xf32, #tpu.memory_space<vmem>>, %arg3: memref<4x16x16xi8, #tpu.memory_space<vmem>>, %arg4: memref<32x128xbf16, #tpu.memory_space<vmem>>, %arg5: memref<128x8xf32, #tpu.memory_space<vmem>>, %arg6: memref<160x32xbf16, #tpu.memory_space<vmem>>, %arg7: memref<1x32xf32, #tpu.memory_space<vmem>>, %arg8: memref<32x32xbf16, #tpu.memory_space<vmem>>, %arg9: memref<1x32xf32, #tpu.memory_space<vmem>>, %arg10: memref<16x32xf32, #tpu.memory_space<vmem>>) attributes {dimension_semantics = [#tpu.dimension_semantics<parallel>], iteration_bounds = array<i64: 1>, scalar_prefetch = 0 : i64, scratch_operands = 0 : i64, tpu.core_type = #tpu.core_type<tc>, window_params = [{pipeline_mode = #tpu.pipeline_mode<synchronous>, transform_indices = @transform_0, window_bounds = array<i64: 16, 32>}, {transform_indices = @transform_1, window_bounds = array<i64: 16, 32>}, {transform_indices = @transform_2, window_bounds = array<i64: 4, 16, 16>}, {pipeline_mode = #tpu.pipeline_mode<synchronous>, transform_indices = @transform_3, window_bounds = array<i64: 32, 128>}, {pipeline_mode = #tpu.pipeline_mode<synchronous>, transform_indices = @transform_4, window_bounds = array<i64: 128, 8>}, {pipeline_mode = #tpu.pipeline_mode<synchronous>, transform_indices = @transform_5, window_bounds = array<i64: 160, 32>}, {pipeline_mode = #tpu.pipeline_mode<synchronous>, transform_indices = @transform_6, window_bounds = array<i64: 1, 32>}, {pipeline_mode = #tpu.pipeline_mode<synchronous>, transform_indices = @transform_7, window_bounds = array<i64: 32, 32>}, {pipeline_mode = #tpu.pipeline_mode<synchronous>, transform_indices = @transform_8, window_bounds = array<i64: 1, 32>}, {transform_indices = @transform_9, window_bounds = array<i64: 16, 32>}]} {
    %c0 = arith.constant 0 : index
    %c0_0 = arith.constant 0 : index
    %0 = vector.load %arg2[%c0, %c0_0] : memref<16x32xf32, #tpu.memory_space<vmem>>, vector<16x32xf32>
    %1 = arith.truncf %0 : vector<16x32xf32> to vector<16x32xbf16>
    %c0_1 = arith.constant 0 : index
    %c0_2 = arith.constant 0 : index
    %2 = vector.load %arg4[%c0_1, %c0_2] : memref<32x128xbf16, #tpu.memory_space<vmem>>, vector<32x128xbf16>
    %c0_3 = arith.constant 0 : index
    %c0_4 = arith.constant 0 : index
    %3 = vector.load %arg1[%c0_3, %c0_4] : memref<16x32xf32, #tpu.memory_space<vmem>>, vector<16x32xf32>
    %4 = arith.truncf %3 : vector<16x32xf32> to vector<16x32xbf16>
    %cst = arith.constant dense<0.000000e+00> : vector<16x128xf32>
    %5 = tpu.matmul %4, %2, %cst {dimension_numbers = #tpu.dot_dimension_numbers<[1], [0], [0], [1], [0, 0, 1, 1], [], []>} : vector<16x32xbf16>, vector<32x128xbf16>, vector<16x128xf32> -> vector<16x128xf32>
    %6 = arith.truncf %5 : vector<16x128xf32> to vector<16x128xbf16>
    %c0_5 = arith.constant 0 : index
    %c0_6 = arith.constant 0 : index
    %7 = vector.load %arg5[%c0_5, %c0_6] : memref<128x8xf32, #tpu.memory_space<vmem>>, vector<128x8xf32>
    %8 = vector.extract_strided_slice %7 {offsets = [0, 0], sizes = [128, 4], strides = [1, 1]} : vector<128x8xf32> to vector<128x4xf32>
    %cst_7 = arith.constant dense<0.000000e+00> : vector<16x4xf32>
    %9 = tpu.matmul %5, %8, %cst_7 {dimension_numbers = #tpu.dot_dimension_numbers<[1], [0], [0], [1], [0, 0, 1, 1], [], []>} : vector<16x128xf32>, vector<128x4xf32>, vector<16x4xf32> -> vector<16x4xf32>
    %10 = tpu.transpose %9, [1, 0] : vector<16x4xf32> -> vector<4x16xf32>
    %cst_8 = arith.constant dense<0.000000e+00> : vector<16x128xf32>
    %11 = tpu.matmul %1, %2, %cst_8 {dimension_numbers = #tpu.dot_dimension_numbers<[1], [0], [0], [1], [0, 0, 1, 1], [], []>} : vector<16x32xbf16>, vector<32x128xbf16>, vector<16x128xf32> -> vector<16x128xf32>
    %12 = vector.extract_strided_slice %7 {offsets = [0, 4], sizes = [128, 4], strides = [1, 1]} : vector<128x8xf32> to vector<128x4xf32>
    %cst_9 = arith.constant dense<0.000000e+00> : vector<16x4xf32>
    %13 = tpu.matmul %11, %12, %cst_9 {dimension_numbers = #tpu.dot_dimension_numbers<[1], [0], [0], [1], [0, 0, 1, 1], [], []>} : vector<16x128xf32>, vector<128x4xf32>, vector<16x4xf32> -> vector<16x4xf32>
    %c0_10 = arith.constant 0 : index
    %c0_11 = arith.constant 0 : index
    %c0_12 = arith.constant 0 : index
    %14 = vector.load %arg3[%c0_10, %c0_11, %c0_12] : memref<4x16x16xi8, #tpu.memory_space<vmem>>, vector<4x16x16xi8>
    %15 = arith.sitofp %14 : vector<4x16x16xi8> to vector<4x16x16xf32>
    %cst_13 = arith.constant -1.000000e+30 : f32
    %16 = vector.broadcast %cst_13 : f32 to vector<4x16x16xf32>
    %17 = arith.mulf %15, %16 : vector<4x16x16xf32>
    %18 = vector.extract_strided_slice %13 {offsets = [0, 0], sizes = [16, 1], strides = [1, 1]} : vector<16x4xf32> to vector<16x1xf32>
    %19 = vector.extract_strided_slice %10 {offsets = [0, 0], sizes = [1, 16], strides = [1, 1]} : vector<4x16xf32> to vector<1x16xf32>
    %20 = vector.broadcast %18 : vector<16x1xf32> to vector<16x16xf32>
    %21 = vector.broadcast %19 : vector<1x16xf32> to vector<16x16xf32>
    %22 = arith.addf %20, %21 : vector<16x16xf32>
    %cst_14 = arith.constant 2.000000e-01 : f32
    %23 = vector.broadcast %cst_14 : f32 to vector<16x16xf32>
    %24 = arith.mulf %23, %22 : vector<16x16xf32>
    %25 = arith.maximumf %22, %24 : vector<16x16xf32>
    %26 = vector.extract_strided_slice %17 {offsets = [0, 0, 0], sizes = [1, 16, 16], strides = [1, 1, 1]} : vector<4x16x16xf32> to vector<1x16x16xf32>
    %27 = vector.shape_cast %26 : vector<1x16x16xf32> to vector<16x16xf32>
    %28 = arith.addf %25, %27 : vector<16x16xf32>
    %cst_15 = arith.constant dense<0xFF800000> : vector<16xf32>
    %29 = vector.multi_reduction <maximumf>, %28, %cst_15 [1] : vector<16x16xf32> to vector<16xf32>
    %30 = vector.shape_cast %29 : vector<16xf32> to vector<16x1xf32>
    %31 = vector.broadcast %30 : vector<16x1xf32> to vector<16x16xf32>
    %32 = arith.subf %28, %31 : vector<16x16xf32>
    %33 = math.exp %32 : vector<16x16xf32>
    %cst_16 = arith.constant dense<0.000000e+00> : vector<16xf32>
    %34 = vector.multi_reduction <add>, %33, %cst_16 [1] : vector<16x16xf32> to vector<16xf32>
    %35 = vector.shape_cast %34 : vector<16xf32> to vector<16x1xf32>
    %36 = arith.truncf %33 : vector<16x16xf32> to vector<16x16xbf16>
    %37 = vector.extract_strided_slice %6 {offsets = [0, 0], sizes = [16, 32], strides = [1, 1]} : vector<16x128xbf16> to vector<16x32xbf16>
    %cst_17 = arith.constant dense<0.000000e+00> : vector<16x32xf32>
    %38 = tpu.matmul %36, %37, %cst_17 {dimension_numbers = #tpu.dot_dimension_numbers<[1], [0], [0], [1], [0, 0, 1, 1], [], []>} : vector<16x16xbf16>, vector<16x32xbf16>, vector<16x32xf32> -> vector<16x32xf32>
    %39 = tpu.reciprocal %35 {approx = true} : vector<16x1xf32> -> vector<16x1xf32>
    %40 = vector.broadcast %39 : vector<16x1xf32> to vector<16x32xf32>
    %41 = arith.mulf %38, %40 : vector<16x32xf32>
    %42 = vector.extract_strided_slice %13 {offsets = [0, 1], sizes = [16, 1], strides = [1, 1]} : vector<16x4xf32> to vector<16x1xf32>
    %43 = vector.extract_strided_slice %10 {offsets = [1, 0], sizes = [1, 16], strides = [1, 1]} : vector<4x16xf32> to vector<1x16xf32>
    %44 = vector.broadcast %42 : vector<16x1xf32> to vector<16x16xf32>
    %45 = vector.broadcast %43 : vector<1x16xf32> to vector<16x16xf32>
    %46 = arith.addf %44, %45 : vector<16x16xf32>
    %cst_18 = arith.constant 2.000000e-01 : f32
    %47 = vector.broadcast %cst_18 : f32 to vector<16x16xf32>
    %48 = arith.mulf %47, %46 : vector<16x16xf32>
    %49 = arith.maximumf %46, %48 : vector<16x16xf32>
    %50 = vector.extract_strided_slice %17 {offsets = [1, 0, 0], sizes = [1, 16, 16], strides = [1, 1, 1]} : vector<4x16x16xf32> to vector<1x16x16xf32>
    %51 = vector.shape_cast %50 : vector<1x16x16xf32> to vector<16x16xf32>
    %52 = arith.addf %49, %51 : vector<16x16xf32>
    %cst_19 = arith.constant dense<0xFF800000> : vector<16xf32>
    %53 = vector.multi_reduction <maximumf>, %52, %cst_19 [1] : vector<16x16xf32> to vector<16xf32>
    %54 = vector.shape_cast %53 : vector<16xf32> to vector<16x1xf32>
    %55 = vector.broadcast %54 : vector<16x1xf32> to vector<16x16xf32>
    %56 = arith.subf %52, %55 : vector<16x16xf32>
    %57 = math.exp %56 : vector<16x16xf32>
    %cst_20 = arith.constant dense<0.000000e+00> : vector<16xf32>
    %58 = vector.multi_reduction <add>, %57, %cst_20 [1] : vector<16x16xf32> to vector<16xf32>
    %59 = vector.shape_cast %58 : vector<16xf32> to vector<16x1xf32>
    %60 = arith.truncf %57 : vector<16x16xf32> to vector<16x16xbf16>
    %61 = vector.extract_strided_slice %6 {offsets = [0, 32], sizes = [16, 32], strides = [1, 1]} : vector<16x128xbf16> to vector<16x32xbf16>
    %cst_21 = arith.constant dense<0.000000e+00> : vector<16x32xf32>
    %62 = tpu.matmul %60, %61, %cst_21 {dimension_numbers = #tpu.dot_dimension_numbers<[1], [0], [0], [1], [0, 0, 1, 1], [], []>} : vector<16x16xbf16>, vector<16x32xbf16>, vector<16x32xf32> -> vector<16x32xf32>
    %63 = tpu.reciprocal %59 {approx = true} : vector<16x1xf32> -> vector<16x1xf32>
    %64 = vector.broadcast %63 : vector<16x1xf32> to vector<16x32xf32>
    %65 = arith.mulf %62, %64 : vector<16x32xf32>
    %66 = vector.extract_strided_slice %13 {offsets = [0, 2], sizes = [16, 1], strides = [1, 1]} : vector<16x4xf32> to vector<16x1xf32>
    %67 = vector.extract_strided_slice %10 {offsets = [2, 0], sizes = [1, 16], strides = [1, 1]} : vector<4x16xf32> to vector<1x16xf32>
    %68 = vector.broadcast %66 : vector<16x1xf32> to vector<16x16xf32>
    %69 = vector.broadcast %67 : vector<1x16xf32> to vector<16x16xf32>
    %70 = arith.addf %68, %69 : vector<16x16xf32>
    %cst_22 = arith.constant 2.000000e-01 : f32
    %71 = vector.broadcast %cst_22 : f32 to vector<16x16xf32>
    %72 = arith.mulf %71, %70 : vector<16x16xf32>
    %73 = arith.maximumf %70, %72 : vector<16x16xf32>
    %74 = vector.extract_strided_slice %17 {offsets = [2, 0, 0], sizes = [1, 16, 16], strides = [1, 1, 1]} : vector<4x16x16xf32> to vector<1x16x16xf32>
    %75 = vector.shape_cast %74 : vector<1x16x16xf32> to vector<16x16xf32>
    %76 = arith.addf %73, %75 : vector<16x16xf32>
    %cst_23 = arith.constant dense<0xFF800000> : vector<16xf32>
    %77 = vector.multi_reduction <maximumf>, %76, %cst_23 [1] : vector<16x16xf32> to vector<16xf32>
    %78 = vector.shape_cast %77 : vector<16xf32> to vector<16x1xf32>
    %79 = vector.broadcast %78 : vector<16x1xf32> to vector<16x16xf32>
    %80 = arith.subf %76, %79 : vector<16x16xf32>
    %81 = math.exp %80 : vector<16x16xf32>
    %cst_24 = arith.constant dense<0.000000e+00> : vector<16xf32>
    %82 = vector.multi_reduction <add>, %81, %cst_24 [1] : vector<16x16xf32> to vector<16xf32>
    %83 = vector.shape_cast %82 : vector<16xf32> to vector<16x1xf32>
    %84 = arith.truncf %81 : vector<16x16xf32> to vector<16x16xbf16>
    %85 = vector.extract_strided_slice %6 {offsets = [0, 64], sizes = [16, 32], strides = [1, 1]} : vector<16x128xbf16> to vector<16x32xbf16>
    %cst_25 = arith.constant dense<0.000000e+00> : vector<16x32xf32>
    %86 = tpu.matmul %84, %85, %cst_25 {dimension_numbers = #tpu.dot_dimension_numbers<[1], [0], [0], [1], [0, 0, 1, 1], [], []>} : vector<16x16xbf16>, vector<16x32xbf16>, vector<16x32xf32> -> vector<16x32xf32>
    %87 = tpu.reciprocal %83 {approx = true} : vector<16x1xf32> -> vector<16x1xf32>
    %88 = vector.broadcast %87 : vector<16x1xf32> to vector<16x32xf32>
    %89 = arith.mulf %86, %88 : vector<16x32xf32>
    %90 = vector.extract_strided_slice %13 {offsets = [0, 3], sizes = [16, 1], strides = [1, 1]} : vector<16x4xf32> to vector<16x1xf32>
    %91 = vector.extract_strided_slice %10 {offsets = [3, 0], sizes = [1, 16], strides = [1, 1]} : vector<4x16xf32> to vector<1x16xf32>
    %92 = vector.broadcast %90 : vector<16x1xf32> to vector<16x16xf32>
    %93 = vector.broadcast %91 : vector<1x16xf32> to vector<16x16xf32>
    %94 = arith.addf %92, %93 : vector<16x16xf32>
    %cst_26 = arith.constant 2.000000e-01 : f32
    %95 = vector.broadcast %cst_26 : f32 to vector<16x16xf32>
    %96 = arith.mulf %95, %94 : vector<16x16xf32>
    %97 = arith.maximumf %94, %96 : vector<16x16xf32>
    %98 = vector.extract_strided_slice %17 {offsets = [3, 0, 0], sizes = [1, 16, 16], strides = [1, 1, 1]} : vector<4x16x16xf32> to vector<1x16x16xf32>
    %99 = vector.shape_cast %98 : vector<1x16x16xf32> to vector<16x16xf32>
    %100 = arith.addf %97, %99 : vector<16x16xf32>
    %cst_27 = arith.constant dense<0xFF800000> : vector<16xf32>
    %101 = vector.multi_reduction <maximumf>, %100, %cst_27 [1] : vector<16x16xf32> to vector<16xf32>
    %102 = vector.shape_cast %101 : vector<16xf32> to vector<16x1xf32>
    %103 = vector.broadcast %102 : vector<16x1xf32> to vector<16x16xf32>
    %104 = arith.subf %100, %103 : vector<16x16xf32>
    %105 = math.exp %104 : vector<16x16xf32>
    %cst_28 = arith.constant dense<0.000000e+00> : vector<16xf32>
    %106 = vector.multi_reduction <add>, %105, %cst_28 [1] : vector<16x16xf32> to vector<16xf32>
    %107 = vector.shape_cast %106 : vector<16xf32> to vector<16x1xf32>
    %108 = arith.truncf %105 : vector<16x16xf32> to vector<16x16xbf16>
    %109 = vector.extract_strided_slice %6 {offsets = [0, 96], sizes = [16, 32], strides = [1, 1]} : vector<16x128xbf16> to vector<16x32xbf16>
    %cst_29 = arith.constant dense<0.000000e+00> : vector<16x32xf32>
    %110 = tpu.matmul %108, %109, %cst_29 {dimension_numbers = #tpu.dot_dimension_numbers<[1], [0], [0], [1], [0, 0, 1, 1], [], []>} : vector<16x16xbf16>, vector<16x32xbf16>, vector<16x32xf32> -> vector<16x32xf32>
    %111 = tpu.reciprocal %107 {approx = true} : vector<16x1xf32> -> vector<16x1xf32>
    %112 = vector.broadcast %111 : vector<16x1xf32> to vector<16x32xf32>
    %113 = arith.mulf %110, %112 : vector<16x32xf32>
    %114 = tpu.concatenate %0, %41, %65, %89, %113 in 1 : vector<16x32xf32>, vector<16x32xf32>, vector<16x32xf32>, vector<16x32xf32>, vector<16x32xf32> -> vector<16x160xf32>
    %115 = arith.truncf %114 : vector<16x160xf32> to vector<16x160xbf16>
    %c0_30 = arith.constant 0 : index
    %c0_31 = arith.constant 0 : index
    %116 = vector.load %arg6[%c0_30, %c0_31] : memref<160x32xbf16, #tpu.memory_space<vmem>>, vector<160x32xbf16>
    %cst_32 = arith.constant dense<0.000000e+00> : vector<16x32xf32>
    %117 = tpu.matmul %115, %116, %cst_32 {dimension_numbers = #tpu.dot_dimension_numbers<[1], [0], [0], [1], [0, 0, 1, 1], [], []>} : vector<16x160xbf16>, vector<160x32xbf16>, vector<16x32xf32> -> vector<16x32xf32>
    %c0_33 = arith.constant 0 : index
    %c0_34 = arith.constant 0 : index
    %118 = vector.load %arg7[%c0_33, %c0_34] : memref<1x32xf32, #tpu.memory_space<vmem>>, vector<1x32xf32>
    %119 = vector.broadcast %118 : vector<1x32xf32> to vector<16x32xf32>
    %120 = arith.addf %117, %119 : vector<16x32xf32>
    %121 = math.tanh %120 : vector<16x32xf32>
    %122 = arith.truncf %121 : vector<16x32xf32> to vector<16x32xbf16>
    %c0_35 = arith.constant 0 : index
    %c0_36 = arith.constant 0 : index
    %123 = vector.load %arg8[%c0_35, %c0_36] : memref<32x32xbf16, #tpu.memory_space<vmem>>, vector<32x32xbf16>
    %cst_37 = arith.constant dense<0.000000e+00> : vector<16x32xf32>
    %124 = tpu.matmul %122, %123, %cst_37 {dimension_numbers = #tpu.dot_dimension_numbers<[1], [0], [0], [1], [0, 0, 1, 1], [], []>} : vector<16x32xbf16>, vector<32x32xbf16>, vector<16x32xf32> -> vector<16x32xf32>
    %c0_38 = arith.constant 0 : index
    %c0_39 = arith.constant 0 : index
    %125 = vector.load %arg9[%c0_38, %c0_39] : memref<1x32xf32, #tpu.memory_space<vmem>>, vector<1x32xf32>
    %126 = vector.broadcast %125 : vector<1x32xf32> to vector<16x32xf32>
    %127 = arith.addf %124, %126 : vector<16x32xf32>
    %c0_40 = arith.constant 0 : index
    %c0_41 = arith.constant 0 : index
    %128 = vector.load %arg10[%c0_40, %c0_41] : memref<16x32xf32, #tpu.memory_space<vmem>>, vector<16x32xf32>
    tpu.vector_store %arg10[%c0_40, %c0_41], %127 {strides = array<i32>} : memref<16x32xf32, #tpu.memory_space<vmem>>, vector<16x32xf32>,
    return
  }
  func.func @transform_0(%arg0: i32) -> (i32, i32) {
    %c0_i32 = arith.constant 0 : i32
    %c0_i32_0 = arith.constant 0 : i32
    %c0_i32_1 = arith.constant 0 : i32
    return %c0_i32, %c0_i32_0 : i32, i32
  }
  func.func @transform_1(%arg0: i32) -> (i32, i32) {
    %c0_i32 = arith.constant 0 : i32
    %c0_i32_0 = arith.constant 0 : i32
    return %arg0, %c0_i32 : i32, i32
  }
  func.func @transform_2(%arg0: i32) -> (i32, i32, i32) {
    %c0_i32 = arith.constant 0 : i32
    %c0_i32_0 = arith.constant 0 : i32
    %c0_i32_1 = arith.constant 0 : i32
    return %c0_i32, %arg0, %c0_i32_0 : i32, i32, i32
  }
  func.func @transform_3(%arg0: i32) -> (i32, i32) {
    %c0_i32 = arith.constant 0 : i32
    %c0_i32_0 = arith.constant 0 : i32
    %c0_i32_1 = arith.constant 0 : i32
    return %c0_i32, %c0_i32_0 : i32, i32
  }
  func.func @transform_4(%arg0: i32) -> (i32, i32) {
    %c0_i32 = arith.constant 0 : i32
    %c0_i32_0 = arith.constant 0 : i32
    %c0_i32_1 = arith.constant 0 : i32
    return %c0_i32, %c0_i32_0 : i32, i32
  }
  func.func @transform_5(%arg0: i32) -> (i32, i32) {
    %c0_i32 = arith.constant 0 : i32
    %c0_i32_0 = arith.constant 0 : i32
    %c0_i32_1 = arith.constant 0 : i32
    return %c0_i32, %c0_i32_0 : i32, i32
  }
  func.func @transform_6(%arg0: i32) -> (i32, i32) {
    %c0_i32 = arith.constant 0 : i32
    %c0_i32_0 = arith.constant 0 : i32
    %c0_i32_1 = arith.constant 0 : i32
    return %c0_i32, %c0_i32_0 : i32, i32
  }
  func.func @transform_7(%arg0: i32) -> (i32, i32) {
    %c0_i32 = arith.constant 0 : i32
    %c0_i32_0 = arith.constant 0 : i32
    %c0_i32_1 = arith.constant 0 : i32
    return %c0_i32, %c0_i32_0 : i32, i32
  }
  func.func @transform_8(%arg0: i32) -> (i32, i32) {
    %c0_i32 = arith.constant 0 : i32
    %c0_i32_0 = arith.constant 0 : i32
    %c0_i32_1 = arith.constant 0 : i32
    return %c0_i32, %c0_i32_0 : i32, i32
  }
  func.func @transform_9(%arg0: i32) -> (i32, i32) {
    %c0_i32 = arith.constant 0 : i32
    %c0_i32_0 = arith.constant 0 : i32
    return %arg0, %c0_i32 : i32, i32
  }
}

</mosaic_0001>

<llo_original>
// kernel: tpu_custom_call.1
$region0: #{tpu_custom_call.1}
  #allocation0 [shape = 'u32[]', space=smem, size = 0x4, offset = 0x4, fixed_abs, tag = 'smem constant byte address 0x4 - core index']
  #allocation1 [shape = 'u32[72,128]{1,0:T(1,128)}', space=vmem, size = 0x9000, scoped, tag = 'internal scratch']
  %s0 = inlined_call_operand.vmem [shape: f32[16,32], index: 0, kind: input, shape index: {}]
  %s1 = inlined_call_operand.vmem [shape: f32[16,32], index: 1, kind: input, shape index: {}]
  %s2 = inlined_call_operand.vmem [shape: s8[4,16,16], index: 2, kind: input, shape index: {}]
  %s3 = inlined_call_operand.vmem [shape: bf16[32,128], index: 3, kind: input, shape index: {}]
  %s4 = inlined_call_operand.vmem [shape: f32[128,8], index: 4, kind: input, shape index: {}]
  %s5 = inlined_call_operand.vmem [shape: bf16[160,32], index: 5, kind: input, shape index: {}]
  %s6 = inlined_call_operand.vmem [shape: f32[1,32], index: 6, kind: input, shape index: {}]
  %s7 = inlined_call_operand.vmem [shape: bf16[32,32], index: 7, kind: input, shape index: {}]
  %s8 = inlined_call_operand.vmem [shape: f32[1,32], index: 8, kind: input, shape index: {}]
  %s9 = inlined_call_operand.hbm [shape: f32[16,32], index: 9, kind: output, shape index: {}]
  %s10 = sld [smem:[#allocation0]]
  $region46: #{tpu_custom_call.1} parent=0
    _
  %s12 = ssub.s32 1, %s10
  %s13 = scalar_select 0, %s12, %s10
  $region1: #{tpu_custom_call.1} parent=0
    #allocation2 [shape = 'u8[8192]{0}', space=vmem, size = 0x2000, scoped, tag = 'output window, operand 0, single buffered']
    #allocation3 [shape = 's32[1]{0}', space=sflag, size = 0x4, scoped, tag = 'scoped memory for tpu_custom_call.1']
    %14 = vsyncpa [#allocation3], 0
    // Predicated region
    $region2: #{tpu_custom_call.1} parent=1 // pred_check
      _
    $region3: #{tpu_custom_call.1} parent=1 // pred_check_branch
      %16 = sbr.rel (0) target = $region5
    $region4: #{tpu_custom_call.1} parent=1 // pred_region
      _
    $region5: #{tpu_custom_call.1} parent=1 // pred_fallthru
      _
    // Predicated region
    $region6: #{tpu_custom_call.1} parent=1 // pred_check
      _
    $region7: #{tpu_custom_call.1} parent=1 // pred_check_branch
      %18 = sbr.rel (0) target = $region9
    $region8: #{tpu_custom_call.1} parent=1 // pred_region
      _
    $region9: #{tpu_custom_call.1} parent=1 // pred_fallthru
      _
    // Predicated region
    $region10: #{tpu_custom_call.1} parent=1 // pred_check
      _
    $region11: #{tpu_custom_call.1} parent=1 // pred_check_branch
      %20 = sbr.rel (0) target = $region13
    $region12: #{tpu_custom_call.1} parent=1 // pred_region
      _
    $region13: #{tpu_custom_call.1} parent=1 // pred_fallthru
      _
    // Predicated region
    $region14: #{tpu_custom_call.1} parent=1 // pred_check
      _
    $region15: #{tpu_custom_call.1} parent=1 // pred_check_branch
      %22 = sbr.rel (0) target = $region17
    $region16: #{tpu_custom_call.1} parent=1 // pred_region
      _
    $region17: #{tpu_custom_call.1} parent=1 // pred_fallthru
      _
    // Predicated region
    $region18: #{tpu_custom_call.1} parent=1 // pred_check
      _
    $region19: #{tpu_custom_call.1} parent=1 // pred_check_branch
      %24 = sbr.rel (0) target = $region21
    $region20: #{tpu_custom_call.1} parent=1 // pred_region
      _
    $region21: #{tpu_custom_call.1} parent=1 // pred_fallthru
      _
    // Predicated region
    $region22: #{tpu_custom_call.1} parent=1 // pred_check
      _
    $region23: #{tpu_custom_call.1} parent=1 // pred_check_branch
      %26 = sbr.rel (0) target = $region25
    $region24: #{tpu_custom_call.1} parent=1 // pred_region
      _
    $region25: #{tpu_custom_call.1} parent=1 // pred_fallthru
      _
    // Predicated region
    $region26: #{tpu_custom_call.1} parent=1 // pred_check
      _
    $region27: #{tpu_custom_call.1} parent=1 // pred_check_branch
      %28 = sbr.rel (0) target = $region29
    $region28: #{tpu_custom_call.1} parent=1 // pred_region
      _
    $region29: #{tpu_custom_call.1} parent=1 // pred_fallthru
      _
    // Predicated region
    $region30: #{tpu_custom_call.1} parent=1 // pred_check
      _
    $region31: #{tpu_custom_call.1} parent=1 // pred_check_branch
      %30 = sbr.rel (0) target = $region33
    $region32: #{tpu_custom_call.1} parent=1 // pred_region
      _
    $region33: #{tpu_custom_call.1} parent=1 // pred_fallthru
      _
    // Predicated region
    $region34: #{tpu_custom_call.1} parent=1 // pred_check
      _
    $region35: #{tpu_custom_call.1} parent=1 // pred_check_branch
      %32 = sbr.rel (0) target = $region37
    $region36: #{tpu_custom_call.1} parent=1 // pred_region
      _
    $region37: #{tpu_custom_call.1} parent=1 // pred_fallthru
      _
    %v34 = vld [vmem:[%s1] sm:$0xff]
    %v35 = vld [vmem:[%s1 + $0x8] sm:$0xff]
    %v36 = vpack.c.bf16 %v35, %v34
    %v37 = vld [vmem:[%s3] sm:$0xf]
    %v38 = vld [vmem:[%s3 + $0x4] sm:$0xf]
    %v39 = vld [vmem:[%s3 + $0x8] sm:$0xf]
    %v40 = vld [vmem:[%s3 + $0xc] sm:$0xf]
    %v41 = vld [vmem:[%s0] sm:$0xff]
    %v42 = vld [vmem:[%s0 + $0x8] sm:$0xff]
    %v43 = vpack.c.bf16 %v42, %v41
    %v48 = vunpack.c.l.b16 %v37
    %v49 = vunpack.c.l.b16 %v38
    %v50 = vunpack.c.l.b16 %v39
    %v51 = vunpack.c.l.b16 %v40
    %v52 = vpack.c.b16 %v49, %v48
    %v53 = vpack.c.b16 %v51, %v50
    %vm56 = vcmask 261120
    %v58 = vsel %vm56, %v43, 0
    %60 = vmatpush.bf16.msra.mxu0 0
    %61 = vmatpush.bf16.msra.mxu0 0
    %62 = vmatpush.bf16.msra.mxu0 0
    %63 = vmatpush.bf16.msra.mxu0 0
    %64 = vmatpush.bf16.msra.mxu0 0
    %65 = vmatpush.bf16.msra.mxu0 0
    %66 = vmatpush.bf16.msra.mxu0 %v53
    %67 = vmatpush.bf16.msra.mxu0 %v52
    %68 = vmatmul.bf16.gmra.mxu0 %v58
    %v69 = vpop.f32.mrf.mxu0
    %v70 = vadd.f32 0.0, %v69
    %v71 = vpop.f32.mrf.mxu0
    %v72 = vadd.f32 0.0, %v71
    %73 = vdwg.mxu0
    %v74 = vpack.c.bf16 %v70, %v70
    %v75 = vpack.c.bf16 %v72, %v72
    %v76 = vld [vmem:[%s4] sm:$0xff]
    %v77 = vld [vmem:[%s4 + $0x8] sm:$0xff]
    %v78 = vld [vmem:[%s4 + $0x10] sm:$0xff]
    %v79 = vld [vmem:[%s4 + $0x18] sm:$0xff]
    %v80 = vld [vmem:[%s4 + $0x20] sm:$0xff]
    %v81 = vld [vmem:[%s4 + $0x28] sm:$0xff]
    %v82 = vld [vmem:[%s4 + $0x30] sm:$0xff]
    %v83 = vld [vmem:[%s4 + $0x38] sm:$0xff]
    %v84 = vld [vmem:[%s4 + $0x40] sm:$0xff]
    %v85 = vld [vmem:[%s4 + $0x48] sm:$0xff]
    %v86 = vld [vmem:[%s4 + $0x50] sm:$0xff]
    %v87 = vld [vmem:[%s4 + $0x58] sm:$0xff]
    %v88 = vld [vmem:[%s4 + $0x60] sm:$0xff]
    %v89 = vld [vmem:[%s4 + $0x68] sm:$0xff]
    %v90 = vld [vmem:[%s4 + $0x70] sm:$0xff]
    %v91 = vld [vmem:[%s4 + $0x78] sm:$0xff]
    %92 = vmatpush.msra.mxu0 %v91
    %93 = vmatpush.msra.mxu0 %v90
    %94 = vmatpush.msra.mxu0 %v89
    %95 = vmatpush.msra.mxu0 %v88
    %96 = vmatpush.msra.mxu0 %v87
    %97 = vmatpush.msra.mxu0 %v86
    %98 = vmatpush.msra.mxu0 %v85
    %99 = vmatpush.msra.mxu0 %v84
    %100 = vmatpush.msra.mxu0 %v83
    %101 = vmatpush.msra.mxu0 %v82
    %102 = vmatpush.msra.mxu0 %v81
    %103 = vmatpush.msra.mxu0 %v80
    %104 = vmatpush.msra.mxu0 %v79
    %105 = vmatpush.msra.mxu0 %v78
    %106 = vmatpush.msra.mxu0 %v77
    %107 = vmatpush.msra.mxu0 %v76
    %108 = vmatmul.f32.gmra.mxu0 %v70
    %v109 = vpop.f32.mrf.mxu0
    %v110 = vadd.f32 0.0, %v109
    %111 = vmatmul.f32.gmra.mxu0 %v72
    %v112 = vpop.f32.mrf.mxu0
    %v113 = vadd.f32 0.0, %v112
    %114 = vdwg.mxu0
    %115 = vxpose.xlu0.b32.start [1/16] %v110, 128
    %116 = vxpose.xlu0.b32.cont [2/16] %v113, 128
    %117 = vxpose.xlu0.b32.cont [3/16] 0.0, 128
    %118 = vxpose.xlu0.b32.cont [4/16] 0.0, 128
    %119 = vxpose.xlu0.b32.cont [5/16] 0.0, 128
    %120 = vxpose.xlu0.b32.cont [6/16] 0.0, 128
    %121 = vxpose.xlu0.b32.cont [7/16] 0.0, 128
    %122 = vxpose.xlu0.b32.cont [8/16] 0.0, 128
    %123 = vxpose.xlu0.b32.cont [9/16] 0.0, 128
    %124 = vxpose.xlu0.b32.cont [10/16] 0.0, 128
    %125 = vxpose.xlu0.b32.cont [11/16] 0.0, 128
    %126 = vxpose.xlu0.b32.cont [12/16] 0.0, 128
    %127 = vxpose.xlu0.b32.cont [13/16] 0.0, 128
    %128 = vxpose.xlu0.b32.cont [14/16] 0.0, 128
    %129 = vxpose.xlu0.b32.cont [15/16] 0.0, 128
    %130 = vxpose.xlu0.b32.end [16/16] 0.0, 128
    %v131 = vpop.trf.xlu0
    %v132 = vpop.trf.xlu0
    %v133 = vpop.trf.xlu0
    %v134 = vpop.trf.xlu0
    %v135 = vpop.trf.xlu0
    %v136 = vpop.trf.xlu0
    %v137 = vpop.trf.xlu0
    %v138 = vpop.trf.xlu0
    %v139 = vpop.trf.xlu0
    %v140 = vpop.trf.xlu0
    %v141 = vpop.trf.xlu0
    %v142 = vpop.trf.xlu0
    %v143 = vpop.trf.xlu0
    %v144 = vpop.trf.xlu0
    %v145 = vpop.trf.xlu0
    %v146 = vpop.trf.xlu0
    %v148 = vsel %vm56, %v36, 0
    %150 = vmatpush.bf16.msra.mxu0 0
    %151 = vmatpush.bf16.msra.mxu0 0
    %152 = vmatpush.bf16.msra.mxu0 0
    %153 = vmatpush.bf16.msra.mxu0 0
    %154 = vmatpush.bf16.msra.mxu0 0
    %155 = vmatpush.bf16.msra.mxu0 0
    %156 = vmatpush.bf16.msra.mxu0 %v53
    %157 = vmatpush.bf16.msra.mxu0 %v52
    %158 = vmatmul.bf16.gmra.mxu0 %v148
    %v159 = vpop.f32.mrf.mxu0
    %v160 = vadd.f32 0.0, %v159
    %v161 = vpop.f32.mrf.mxu0
    %v162 = vadd.f32 0.0, %v161
    %163 = vdwg.mxu0
    %180 = vrot.lane.b32.xlu0 %v76, 124
    %v181 = vpop.permute.xlu0 %180
    %182 = vrot.lane.b32.xlu0 %v77, 124
    %v183 = vpop.permute.xlu0 %182
    %184 = vrot.lane.b32.xlu0 %v78, 124
    %v185 = vpop.permute.xlu0 %184
    %186 = vrot.lane.b32.xlu0 %v79, 124
    %v187 = vpop.permute.xlu0 %186
    %188 = vrot.lane.b32.xlu0 %v80, 124
    %v189 = vpop.permute.xlu0 %188
    %190 = vrot.lane.b32.xlu0 %v81, 124
    %v191 = vpop.permute.xlu0 %190
    %192 = vrot.lane.b32.xlu0 %v82, 124
    %v193 = vpop.permute.xlu0 %192
    %194 = vrot.lane.b32.xlu0 %v83, 124
    %v195 = vpop.permute.xlu0 %194
    %196 = vrot.lane.b32.xlu0 %v84, 124
    %v197 = vpop.permute.xlu0 %196
    %198 = vrot.lane.b32.xlu0 %v85, 124
    %v199 = vpop.permute.xlu0 %198
    %200 = vrot.lane.b32.xlu0 %v86, 124
    %v201 = vpop.permute.xlu0 %200
    %202 = vrot.lane.b32.xlu0 %v87, 124
    %v203 = vpop.permute.xlu0 %202
    %204 = vrot.lane.b32.xlu0 %v88, 124
    %v205 = vpop.permute.xlu0 %204
    %206 = vrot.lane.b32.xlu0 %v89, 124
    %v207 = vpop.permute.xlu0 %206
    %208 = vrot.lane.b32.xlu0 %v90, 124
    %v209 = vpop.permute.xlu0 %208
    %210 = vrot.lane.b32.xlu0 %v91, 124
    %v211 = vpop.permute.xlu0 %210
    %228 = vmatpush.msra.mxu0 %v211
    %229 = vmatpush.msra.mxu0 %v209
    %230 = vmatpush.msra.mxu0 %v207
    %231 = vmatpush.msra.mxu0 %v205
    %232 = vmatpush.msra.mxu0 %v203
    %233 = vmatpush.msra.mxu0 %v201
    %234 = vmatpush.msra.mxu0 %v199
    %235 = vmatpush.msra.mxu0 %v197
    %236 = vmatpush.msra.mxu0 %v195
    %237 = vmatpush.msra.mxu0 %v193
    %238 = vmatpush.msra.mxu0 %v191
    %239 = vmatpush.msra.mxu0 %v189
    %240 = vmatpush.msra.mxu0 %v187
    %241 = vmatpush.msra.mxu0 %v185
    %242 = vmatpush.msra.mxu0 %v183
    %243 = vmatpush.msra.mxu0 %v181
    %244 = vmatmul.f32.gmra.mxu0 %v160
    %v245 = vpop.f32.mrf.mxu0
    %v246 = vadd.f32 0.0, %v245
    %247 = vmatmul.f32.gmra.mxu0 %v162
    %v248 = vpop.f32.mrf.mxu0
    %v249 = vadd.f32 0.0, %v248
    %250 = vdwg.mxu0
    %v251 = vld [vmem:[%s2] sm:$0x3]
    %v252 = vld [vmem:[%s2 + $0x2] sm:$0x3]
    %v253 = vld [vmem:[%s2 + $0x4] sm:$0x3]
    %v254 = vld [vmem:[%s2 + $0x6] sm:$0x3]
    %v255 = vld [vmem:[%s2 + $0x8] sm:$0x3]
    %v256 = vld [vmem:[%s2 + $0xa] sm:$0x3]
    %v257 = vld [vmem:[%s2 + $0xc] sm:$0x3]
    %v258 = vld [vmem:[%s2 + $0xe] sm:$0x3]
    %v259 = vunpack.c.0.s8 %v251
    %v260 = vunpack.c.0.s8 %v252
    %v261 = vunpack.c.0.s8 %v253
    %v262 = vunpack.c.0.s8 %v254
    %v263 = vunpack.c.0.s8 %v255
    %v264 = vunpack.c.0.s8 %v256
    %v265 = vunpack.c.0.s8 %v257
    %v266 = vunpack.c.0.s8 %v258
    %v267 = vcvt.s32.f32 %v259
    %v268 = vcvt.s32.f32 %v260
    %v269 = vcvt.s32.f32 %v261
    %v270 = vcvt.s32.f32 %v262
    %v271 = vcvt.s32.f32 %v263
    %v272 = vcvt.s32.f32 %v264
    %v273 = vcvt.s32.f32 %v265
    %v274 = vcvt.s32.f32 %v266
    %v275 = vmul.f32 %v267, -1e+30
    %v276 = vmul.f32 %v268, -1e+30
    %v277 = vmul.f32 %v269, -1e+30
    %v278 = vmul.f32 %v270, -1e+30
    %v279 = vmul.f32 %v271, -1e+30
    %v280 = vmul.f32 %v272, -1e+30
    %v281 = vmul.f32 %v273, -1e+30
    %v282 = vmul.f32 %v274, -1e+30
    %284 = vset.pattern.permute.xlu0 0
    %285 = vperm.xlu0 %284, %v246
    %v286 = vpop.permute.xlu0 %285
    %289 = vset.pattern.permute.xlu0 0
    %290 = vperm.xlu0 %289, %v249
    %v291 = vpop.permute.xlu0 %290
    %v293 = vperm.slane %v131, 0
    %v294 = vadd.f32 %v286, %v293
    %v295 = vadd.f32 %v291, %v293
    %v296 = vmul.f32 %v294, 0.2
    %v297 = vmul.f32 %v295, 0.2
    %v298 = vmax.f32 %v294, %v296
    %v299 = vmax.f32 %v295, %v297
    %v300 = vadd.f32 %v298, %v275
    %v301 = vadd.f32 %v299, %v276
    %vm302 = vcmask 130048
    %v303 = vsel %vm302, %v300, -inf
    %304 = vmax.xlane.f32.xlu0 %v303
    %v305 = vpop.xlane.xlu0 %304
    %v306 = vsel %vm302, %v301, -inf
    %307 = vmax.xlane.f32.xlu0 %v306
    %v308 = vpop.xlane.xlu0 %307
    %v309 = vsub.f32 %v300, %v305
    %v310 = vsub.f32 %v301, %v308
    %v311 = vmul.f32 %v309, 1.442695
    %v312 = vpow.pop %v311
    %v313 = vmul.f32 %v310, 1.442695
    %v314 = vpow.pop %v313
    %v315 = vsel %vm302, %v312, 0.0
    %316 = vadd.xlane.f32.xlu0 %v315
    %v317 = vpop.xlane.xlu0 %316
    %v318 = vsel %vm302, %v314, 0.0
    %319 = vadd.xlane.f32.xlu0 %v318
    %v320 = vpop.xlane.xlu0 %319
    %v321 = vpack.c.bf16 %v314, %v312
    %v324 = vunpack.c.l.b16 %v74
    %v325 = vunpack.c.l.b16 %v75
    %v326 = vpack.c.b16 %v325, %v324
    %v329 = vsel %vm302, %v321, 0
    %331 = vmatpush.bf16.msra.mxu0 0
    %332 = vmatpush.bf16.msra.mxu0 0
    %333 = vmatpush.bf16.msra.mxu0 0
    %334 = vmatpush.bf16.msra.mxu0 0
    %335 = vmatpush.bf16.msra.mxu0 0
    %336 = vmatpush.bf16.msra.mxu0 0
    %337 = vmatpush.bf16.msra.mxu0 0
    %338 = vmatpush.bf16.msra.mxu0 %v326
    %339 = vmatmul.bf16.gmra.mxu0 %v329
    %v340 = vpop.f32.mrf.mxu0
    %v341 = vadd.f32 0.0, %v340
    %v342 = vpop.f32.mrf.mxu0
    %v343 = vadd.f32 0.0, %v342
    %344 = vdwg.mxu0
    %v345 = vrcp.pop %v317
    %v346 = vrcp.pop %v320
    %v347 = vmul.f32 %v341, %v345
    %v348 = vmul.f32 %v343, %v346
    %349 = vset.pattern.permute.xlu0 1
    %350 = vperm.xlu0 %349, %v246
    %v351 = vpop.permute.xlu0 %350
    %353 = vset.pattern.permute.xlu0 1
    %354 = vperm.xlu0 %353, %v249
    %v355 = vpop.permute.xlu0 %354
    %v357 = vperm.slane %v131, 1
    %v358 = vadd.f32 %v351, %v357
    %v359 = vadd.f32 %v355, %v357
    %v360 = vmul.f32 %v358, 0.2
    %v361 = vmul.f32 %v359, 0.2
    %v362 = vmax.f32 %v358, %v360
    %v363 = vmax.f32 %v359, %v361
    %v364 = vadd.f32 %v362, %v277
    %v365 = vadd.f32 %v363, %v278
    %v366 = vsel %vm302, %v364, -inf
    %367 = vmax.xlane.f32.xlu0 %v366
    %v368 = vpop.xlane.xlu0 %367
    %v369 = vsel %vm302, %v365, -inf
    %370 = vmax.xlane.f32.xlu0 %v369
    %v371 = vpop.xlane.xlu0 %370
    %v372 = vsub.f32 %v364, %v368
    %v373 = vsub.f32 %v365, %v371
    %v374 = vmul.f32 %v372, 1.442695
    %v375 = vpow.pop %v374
    %v376 = vmul.f32 %v373, 1.442695
    %v377 = vpow.pop %v376
    %v378 = vsel %vm302, %v375, 0.0
    %379 = vadd.xlane.f32.xlu0 %v378
    %v380 = vpop.xlane.xlu0 %379
    %v381 = vsel %vm302, %v377, 0.0
    %382 = vadd.xlane.f32.xlu0 %v381
    %v383 = vpop.xlane.xlu0 %382
    %v384 = vpack.c.bf16 %v377, %v375
    %385 = vrot.lane.b32.xlu0 %v326, 96
    %v386 = vpop.permute.xlu0 %385
    %v389 = vsel %vm302, %v384, 0
    %391 = vmatpush.bf16.msra.mxu0 0
    %392 = vmatpush.bf16.msra.mxu0 0
    %393 = vmatpush.bf16.msra.mxu0 0
    %394 = vmatpush.bf16.msra.mxu0 0
    %395 = vmatpush.bf16.msra.mxu0 0
    %396 = vmatpush.bf16.msra.mxu0 0
    %397 = vmatpush.bf16.msra.mxu0 0
    %398 = vmatpush.bf16.msra.mxu0 %v386
    %399 = vmatmul.bf16.gmra.mxu0 %v389
    %v400 = vpop.f32.mrf.mxu0
    %v401 = vadd.f32 0.0, %v400
    %v402 = vpop.f32.mrf.mxu0
    %v403 = vadd.f32 0.0, %v402
    %404 = vdwg.mxu0
    %v405 = vrcp.pop %v380
    %v406 = vrcp.pop %v383
    %v407 = vmul.f32 %v401, %v405
    %v408 = vmul.f32 %v403, %v406
    %409 = vset.pattern.permute.xlu0 2
    %410 = vperm.xlu0 %409, %v246
    %v411 = vpop.permute.xlu0 %410
    %413 = vset.pattern.permute.xlu0 2
    %414 = vperm.xlu0 %413, %v249
    %v415 = vpop.permute.xlu0 %414
    %v417 = vperm.slane %v131, 2
    %v418 = vadd.f32 %v411, %v417
    %v419 = vadd.f32 %v415, %v417
    %v420 = vmul.f32 %v418, 0.2
    %v421 = vmul.f32 %v419, 0.2
    %v422 = vmax.f32 %v418, %v420
    %v423 = vmax.f32 %v419, %v421
    %v424 = vadd.f32 %v422, %v279
    %v425 = vadd.f32 %v423, %v280
    %v426 = vsel %vm302, %v424, -inf
    %427 = vmax.xlane.f32.xlu0 %v426
    %v428 = vpop.xlane.xlu0 %427
    %v429 = vsel %vm302, %v425, -inf
    %430 = vmax.xlane.f32.xlu0 %v429
    %v431 = vpop.xlane.xlu0 %430
    %v432 = vsub.f32 %v424, %v428
    %v433 = vsub.f32 %v425, %v431
    %v434 = vmul.f32 %v432, 1.442695
    %v435 = vpow.pop %v434
    %v436 = vmul.f32 %v433, 1.442695
    %v437 = vpow.pop %v436
    %v438 = vsel %vm302, %v435, 0.0
    %439 = vadd.xlane.f32.xlu0 %v438
    %v440 = vpop.xlane.xlu0 %439
    %v441 = vsel %vm302, %v437, 0.0
    %442 = vadd.xlane.f32.xlu0 %v441
    %v443 = vpop.xlane.xlu0 %442
    %v444 = vpack.c.bf16 %v437, %v435
    %445 = vrot.lane.b32.xlu0 %v326, 64
    %v446 = vpop.permute.xlu0 %445
    %v449 = vsel %vm302, %v444, 0
    %451 = vmatpush.bf16.msra.mxu0 0
    %452 = vmatpush.bf16.msra.mxu0 0
    %453 = vmatpush.bf16.msra.mxu0 0
    %454 = vmatpush.bf16.msra.mxu0 0
    %455 = vmatpush.bf16.msra.mxu0 0
    %456 = vmatpush.bf16.msra.mxu0 0
    %457 = vmatpush.bf16.msra.mxu0 0
    %458 = vmatpush.bf16.msra.mxu0 %v446
    %459 = vmatmul.bf16.gmra.mxu0 %v449
    %v460 = vpop.f32.mrf.mxu0
    %v461 = vadd.f32 0.0, %v460
    %v462 = vpop.f32.mrf.mxu0
    %v463 = vadd.f32 0.0, %v462
    %464 = vdwg.mxu0
    %v465 = vrcp.pop %v440
    %v466 = vrcp.pop %v443
    %v467 = vmul.f32 %v461, %v465
    %v468 = vmul.f32 %v463, %v466
    %469 = vset.pattern.permute.xlu0 3
    %470 = vperm.xlu0 %469, %v246
    %v471 = vpop.permute.xlu0 %470
    %473 = vset.pattern.permute.xlu0 3
    %474 = vperm.xlu0 %473, %v249
    %v475 = vpop.permute.xlu0 %474
    %v477 = vperm.slane %v131, 3
    %v478 = vadd.f32 %v471, %v477
    %v479 = vadd.f32 %v475, %v477
    %v480 = vmul.f32 %v478, 0.2
    %v481 = vmul.f32 %v479, 0.2
    %v482 = vmax.f32 %v478, %v480
    %v483 = vmax.f32 %v479, %v481
    %v484 = vadd.f32 %v482, %v281
    %v485 = vadd.f32 %v483, %v282
    %v486 = vsel %vm302, %v484, -inf
    %487 = vmax.xlane.f32.xlu0 %v486
    %v488 = vpop.xlane.xlu0 %487
    %v489 = vsel %vm302, %v485, -inf
    %490 = vmax.xlane.f32.xlu0 %v489
    %v491 = vpop.xlane.xlu0 %490
    %v492 = vsub.f32 %v484, %v488
    %v493 = vsub.f32 %v485, %v491
    %v494 = vmul.f32 %v492, 1.442695
    %v495 = vpow.pop %v494
    %v496 = vmul.f32 %v493, 1.442695
    %v497 = vpow.pop %v496
    %v498 = vsel %vm302, %v495, 0.0
    %499 = vadd.xlane.f32.xlu0 %v498
    %v500 = vpop.xlane.xlu0 %499
    %v501 = vsel %vm302, %v497, 0.0
    %502 = vadd.xlane.f32.xlu0 %v501
    %v503 = vpop.xlane.xlu0 %502
    %v504 = vpack.c.bf16 %v497, %v495
    %505 = vrot.lane.b32.xlu0 %v326, 32
    %v506 = vpop.permute.xlu0 %505
    %v509 = vsel %vm302, %v504, 0
    %511 = vmatpush.bf16.msra.mxu0 0
    %512 = vmatpush.bf16.msra.mxu0 0
    %513 = vmatpush.bf16.msra.mxu0 0
    %514 = vmatpush.bf16.msra.mxu0 0
    %515 = vmatpush.bf16.msra.mxu0 0
    %516 = vmatpush.bf16.msra.mxu0 0
    %517 = vmatpush.bf16.msra.mxu0 0
    %518 = vmatpush.bf16.msra.mxu0 %v506
    %519 = vmatmul.bf16.gmra.mxu0 %v509
    %v520 = vpop.f32.mrf.mxu0
    %v521 = vadd.f32 0.0, %v520
    %v522 = vpop.f32.mrf.mxu0
    %v523 = vadd.f32 0.0, %v522
    %524 = vdwg.mxu0
    %v525 = vrcp.pop %v500
    %v526 = vrcp.pop %v503
    %v527 = vmul.f32 %v521, %v525
    %v528 = vmul.f32 %v523, %v526
    %531 = vrot.lane.b32.xlu0 %v347, 32
    %v532 = vpop.permute.xlu0 %531
    %533 = vrot.lane.b32.xlu0 %v348, 32
    %v534 = vpop.permute.xlu0 %533
    %539 = vrot.lane.b32.xlu0 %v407, 64
    %v540 = vpop.permute.xlu0 %539
    %541 = vrot.lane.b32.xlu0 %v408, 64
    %v542 = vpop.permute.xlu0 %541
    %547 = vrot.lane.b32.xlu0 %v467, 96
    %v548 = vpop.permute.xlu0 %547
    %549 = vrot.lane.b32.xlu0 %v468, 96
    %v550 = vpop.permute.xlu0 %549
    %v553 = vsel %vm56, %v34, %v532
    %v554 = vsel %vm56, %v35, %v534
    %vm555 = vcmask 523264
    %v556 = vsel %vm555, %v553, %v540
    %v557 = vsel %vm555, %v554, %v542
    %vm558 = vcmask 785408
    %v559 = vsel %vm558, %v556, %v548
    %v560 = vsel %vm558, %v557, %v550
    %v561 = vpack.c.bf16 %v560, %v559
    %v562 = vpack.c.bf16 %v528, %v527
    %v563 = vld [vmem:[%s5] sm:$0xf]
    %v564 = vld [vmem:[%s5 + $0x4] sm:$0xf]
    %v565 = vld [vmem:[%s5 + $0x8] sm:$0xf]
    %v566 = vld [vmem:[%s5 + $0xc] sm:$0xf]
    %v567 = vld [vmem:[%s5 + $0x10] sm:$0xf]
    %v568 = vld [vmem:[%s5 + $0x14] sm:$0xf]
    %v569 = vld [vmem:[%s5 + $0x18] sm:$0xf]
    %v570 = vld [vmem:[%s5 + $0x1c] sm:$0xf]
    %v571 = vld [vmem:[%s5 + $0x20] sm:$0xf]
    %v572 = vld [vmem:[%s5 + $0x24] sm:$0xf]
    %v573 = vld [vmem:[%s5 + $0x28] sm:$0xf]
    %v574 = vld [vmem:[%s5 + $0x2c] sm:$0xf]
    %v575 = vld [vmem:[%s5 + $0x30] sm:$0xf]
    %v576 = vld [vmem:[%s5 + $0x34] sm:$0xf]
    %v577 = vld [vmem:[%s5 + $0x38] sm:$0xf]
    %v578 = vld [vmem:[%s5 + $0x3c] sm:$0xf]
    %v579 = vld [vmem:[%s5 + $0x40] sm:$0xf]
    %v580 = vld [vmem:[%s5 + $0x44] sm:$0xf]
    %v581 = vld [vmem:[%s5 + $0x48] sm:$0xf]
    %v582 = vld [vmem:[%s5 + $0x4c] sm:$0xf]
    %v583 = vld [vmem:[%s6] sm:$0x1]
    %v585 = vperm.slane %v583, 0
    %v607 = vunpack.c.l.b16 %v563
    %v608 = vunpack.c.l.b16 %v564
    %v609 = vunpack.c.l.b16 %v565
    %v610 = vunpack.c.l.b16 %v566
    %v611 = vunpack.c.l.b16 %v567
    %v612 = vunpack.c.l.b16 %v568
    %v613 = vunpack.c.l.b16 %v569
    %v614 = vunpack.c.l.b16 %v570
    %v615 = vunpack.c.l.b16 %v571
    %v616 = vunpack.c.l.b16 %v572
    %v617 = vunpack.c.l.b16 %v573
    %v618 = vunpack.c.l.b16 %v574
    %v619 = vunpack.c.l.b16 %v575
    %v620 = vunpack.c.l.b16 %v576
    %v621 = vunpack.c.l.b16 %v577
    %v622 = vunpack.c.l.b16 %v578
    %v623 = vunpack.c.l.b16 %v579
    %v624 = vunpack.c.l.b16 %v580
    %v625 = vunpack.c.l.b16 %v581
    %v626 = vunpack.c.l.b16 %v582
    %v627 = vpack.c.b16 %v608, %v607
    %v628 = vpack.c.b16 %v610, %v609
    %v629 = vpack.c.b16 %v612, %v611
    %v630 = vpack.c.b16 %v614, %v613
    %v631 = vpack.c.b16 %v616, %v615
    %v632 = vpack.c.b16 %v618, %v617
    %v633 = vpack.c.b16 %v620, %v619
    %v634 = vpack.c.b16 %v622, %v621
    %v635 = vpack.c.b16 %v624, %v623
    %v636 = vpack.c.b16 %v626, %v625
    %v648 = vsel %vm56, %v562, 0
    %650 = vmatpush.bf16.msra.mxu0 %v634
    %651 = vmatpush.bf16.msra.mxu0 %v633
    %652 = vmatpush.bf16.msra.mxu0 %v632
    %653 = vmatpush.bf16.msra.mxu0 %v631
    %654 = vmatpush.bf16.msra.mxu0 %v630
    %655 = vmatpush.bf16.msra.mxu0 %v629
    %656 = vmatpush.bf16.msra.mxu0 %v628
    %657 = vmatpush.bf16.msra.mxu0 %v627
    %658 = vmatmul.bf16.gmra.mxu0 %v561
    %v659 = vpop.f32.mrf.mxu0
    %v660 = vadd.f32 %v585, %v659
    %v661 = vpop.f32.mrf.mxu0
    %v662 = vadd.f32 %v585, %v661
    %663 = vdwg.mxu0
    %664 = vmatpush.bf16.msra.mxu0 0
    %665 = vmatpush.bf16.msra.mxu0 0
    %666 = vmatpush.bf16.msra.mxu0 0
    %667 = vmatpush.bf16.msra.mxu0 0
    %668 = vmatpush.bf16.msra.mxu0 0
    %669 = vmatpush.bf16.msra.mxu0 0
    %670 = vmatpush.bf16.msra.mxu0 %v636
    %671 = vmatpush.bf16.msra.mxu0 %v635
    %672 = vmatmul.bf16.gmra.mxu0 %v648
    %v673 = vpop.f32.mrf.mxu0
    %v674 = vadd.f32 %v660, %v673
    %v675 = vpop.f32.mrf.mxu0
    %v676 = vadd.f32 %v662, %v675
    %677 = vdwg.mxu0
    %v678 = vtanh.pop %v674
    %v679 = vtanh.pop %v676
    %v680 = vpack.c.bf16 %v679, %v678
    %v681 = vld [vmem:[%s7] sm:$0xf]
    %v682 = vld [vmem:[%s7 + $0x4] sm:$0xf]
    %v683 = vld [vmem:[%s7 + $0x8] sm:$0xf]
    %v684 = vld [vmem:[%s7 + $0xc] sm:$0xf]
    %v685 = vld [vmem:[%s8] sm:$0x1]
    %v687 = vperm.slane %v685, 0
    %v693 = vunpack.c.l.b16 %v681
    %v694 = vunpack.c.l.b16 %v682
    %v695 = vunpack.c.l.b16 %v683
    %v696 = vunpack.c.l.b16 %v684
    %v697 = vpack.c.b16 %v694, %v693
    %v698 = vpack.c.b16 %v696, %v695
    %v702 = vsel %vm56, %v680, 0
    %704 = vmatpush.bf16.msra.mxu0 0
    %705 = vmatpush.bf16.msra.mxu0 0
    %706 = vmatpush.bf16.msra.mxu0 0
    %707 = vmatpush.bf16.msra.mxu0 0
    %708 = vmatpush.bf16.msra.mxu0 0
    %709 = vmatpush.bf16.msra.mxu0 0
    %710 = vmatpush.bf16.msra.mxu0 %v698
    %711 = vmatpush.bf16.msra.mxu0 %v697
    %712 = vmatmul.bf16.gmra.mxu0 %v702
    %v713 = vpop.f32.mrf.mxu0
    %v714 = vadd.f32 %v687, %v713
    %v715 = vpop.f32.mrf.mxu0
    %v716 = vadd.f32 %v687, %v715
    %717 = vdwg.mxu0
    %718 = vst.msk [vmem:[#allocation2] sm:$0xff] %vm56, %v714
    %719 = vst.msk [vmem:[#allocation2 + $0x8] sm:$0xff] %vm56, %v716
    // Predicated region
    $region38: #{tpu_custom_call.1} parent=1 // pred_check
      _
    $region39: #{tpu_custom_call.1} parent=1 // pred_check_branch
      %721 = sbr.rel (0) target = $region41
    $region40: #{tpu_custom_call.1} parent=1 // pred_region
      %723 = vsyncadd [#allocation3], 0
      %s724 = sshll.u32 [#allocation2], 4
      %s725 = int_to_ptr.vmem [resolvable:$true] %s724
      %s726 = sshll.u32 %s9, 4
      %s727 = int_to_ptr.hbm [resolvable:$true] %s726
      %732 = dma.vmem_to_hbm [thread:$0]  %s725, 256, %s727, [#allocation3], 128, 128, 8
    $region41: #{tpu_custom_call.1} parent=1 // pred_fallthru
      _
    // Predicated region
    $region42: #{tpu_custom_call.1} parent=1 // pred_check
      _
    $region43: #{tpu_custom_call.1} parent=1 // pred_check_branch
      %734 = sbr.rel (0) target = $region45
    $region44: #{tpu_custom_call.1} parent=1 // pred_region
      %736 = dma.done [#allocation3], 256
    $region45: #{tpu_custom_call.1} parent=1 // pred_fallthru
      _
    %737 = vsyncpa [#allocation3], 1

</llo_original>
